<compile_context>
chip_gen: v6e
topology: v6e:2x2x1
jax: 0.10.0
libtpu: 0.0.40
codegen_flags: <defaults>
</compile_context>

<pallas_src>
import functools

import jax
import jax.numpy as jnp
import numpy as np
from jax.experimental import pallas as pl
from jax.experimental.pallas import tpu as pltpu


def _focal_kernel(logits_ref, targets_ref, out_ref, acc_ref, *,
                  gamma, alpha, hw, rows, ji_steps, j_total, needs_mask):
    ji = pl.program_id(2)
    jglob = pl.program_id(1) * ji_steps + ji        # global row-block index

    @pl.when(ji == 0)
    def _():
        acc_ref[...] = jnp.zeros_like(acc_ref)

    x = logits_ref[0].astype(jnp.float32)           # (C, T, 128)
    tgt = targets_ref[0, 0]                         # (T, 128) int32

    # Channel c corresponds to class label c+1 (background label 0 is dropped).
    cls = jax.lax.broadcasted_iota(jnp.int32, x.shape, 0) + 1
    onehot = tgt[None, :, :] == cls                 # bool (C, T, 128)

    # Numerically stable BCE-with-logits; e = exp(-|x|) is reused for the sigmoid
    # so there is only one exp per element.
    e = jnp.exp(-jnp.abs(x))
    bce = jnp.maximum(x, 0.0) - jnp.where(onehot, x, 0.0) + jnp.log1p(e)
    r = 1.0 / (1.0 + e)
    p = jnp.where(x >= 0.0, r, e * r)               # == sigmoid(x)

    pt = jnp.where(onehot, p, 1.0 - p)
    one_m_pt = 1.0 - pt
    if gamma == 2.0:                                # default: square via VPU mul
        focal = one_m_pt * one_m_pt
    elif gamma == 1.0:
        focal = one_m_pt
    elif gamma == 0.0:
        focal = jnp.ones_like(one_m_pt)
    elif float(gamma).is_integer() and 0.0 < gamma <= 8.0:
        focal = one_m_pt
        for _ in range(int(gamma) - 1):             # unrolled integer power (VPU)
            focal = focal * one_m_pt
    else:
        focal = jnp.power(one_m_pt, gamma)
    loss = focal * bce

    if alpha >= 0:
        loss = jnp.where(onehot, jnp.float32(alpha), jnp.float32(1.0 - alpha)) * loss

    # Collapse the (small) channel axis per step so the accumulator is only (T, 128).
    reduced = loss.sum(axis=0)                      # (T, 128)

    if needs_mask:
        # Only the globally-last row block can contain padded positions; mask with a
        # select (not a multiply) after the channel reduce, only on that block.
        @pl.when(jglob == j_total - 1)
        def _():
            row = jax.lax.broadcasted_iota(jnp.int32, reduced.shape, 0)
            lane = jax.lax.broadcasted_iota(jnp.int32, reduced.shape, 1)
            flat = (jglob * rows + row) * 128 + lane
            acc_ref[...] += jnp.where(flat < hw, reduced, 0.0)

        @pl.when(jglob != j_total - 1)
        def _():
            acc_ref[...] += reduced
    else:
        acc_ref[...] += reduced

    @pl.when(ji == ji_steps - 1)
    def _():
        out_ref[0, 0] = acc_ref[...]


def _pick_rows(n_channels, rows_total, itemsize, budget_bytes):
    """Rows (sublane axis) per block: as many as fit in ~budget_bytes of logits."""
    # TODO(synk): very large C (>~1000) would need channel tiling to respect budget.
    mult = 8 * max(1, 4 // itemsize)                # 8 (f32/i32), 16 (bf16), 32 (i8)
    budget_rows = budget_bytes // (itemsize * max(n_channels, 1) * 128)
    if budget_rows >= rows_total or rows_total <= mult:
        return rows_total                           # single block / full-dim (legal)
    return max(mult, (budget_rows // mult) * mult)


def focal_loss_with_logits_tpu(logits, targets, *, gamma=2.0, alpha=-1.0,
                               reduction="sum", loss_weight=1.0,
                               block_bytes=2 * 1024 * 1024):
    """logits: [N, C, *dims] float (f32/bf16); targets: [N, *dims] int (0=background)."""
    N = logits.shape[0]
    C = logits.shape[1]
    dims = logits.shape[2:]
    HW = int(np.prod(dims)) if dims else 1

    # TODO(synk): int8/int16 targets could be streamed natively to save HBM BW;
    # int32 targets pass through with no wrapper-side cast.
    if targets.dtype != jnp.int32:
        targets = targets.astype(jnp.int32)

    logits3 = logits.reshape(N, C, HW)              # free reshape, no transpose
    targets3 = targets.reshape(N, 1, HW)

    itemsize = jnp.dtype(logits.dtype).itemsize
    rows_total = pl.cdiv(HW, 128)                   # spatial rows of 128 lanes
    T = _pick_rows(C, rows_total, itemsize, block_bytes)
    J = pl.cdiv(rows_total, T)                      # number of row blocks
    R = J * T                                       # rows after block alignment
    HW_pad = R * 128

    if HW_pad != HW:                                # only for awkward spatial sizes
        pad = HW_pad - HW
        logits3 = jnp.pad(logits3, ((0, 0), (0, 0), (0, pad)))
        targets3 = jnp.pad(targets3, ((0, 0), (0, 0), (0, pad)))

    # Sublane-packed 4-D views: last two dims (rows, 128) map to (sublane, lane).
    logits4 = logits3.reshape(N, C, R, 128)
    targets4 = targets3.reshape(N, 1, R, 128)

    # Split the row-block axis so both v7x TensorCores get work even when N == 1.
    JO = 2 if (J >= 2 and J % 2 == 0) else 1
    JI = J // JO

    kernel = functools.partial(
        _focal_kernel, gamma=float(gamma), alpha=float(alpha), hw=HW,
        rows=T, ji_steps=JI, j_total=J, needs_mask=(HW_pad != HW))

    partials = pl.pallas_call(
        kernel,
        out_shape=jax.ShapeDtypeStruct((N, JO, T, 128), jnp.float32),
        grid_spec=pltpu.PrefetchScalarGridSpec(
            num_scalar_prefetch=0,
            grid=(N, JO, JI),
            in_specs=[
                pl.BlockSpec((1, C, T, 128),
                             lambda n, jo, ji: (n, 0, jo * JI + ji, 0)),
                pl.BlockSpec((1, 1, T, 128),
                             lambda n, jo, ji: (n, 0, jo * JI + ji, 0)),
            ],
            out_specs=pl.BlockSpec((1, 1, T, 128),
                                   lambda n, jo, ji: (n, jo, 0, 0)),
            scratch_shapes=[pltpu.VMEM((T, 128), jnp.float32)],
        ),
        compiler_params=pltpu.CompilerParams(
            dimension_semantics=("parallel", "parallel", "arbitrary"),
            vmem_limit_bytes=32 * 1024 * 1024),
    )(logits4, targets4)

    loss_sum = jnp.sum(partials)                    # tiny final reduction

    if reduction == "sum":
        out = loss_sum
    elif reduction == "mean":
        out = loss_sum / jnp.float32(N * C * HW)
    else:
        # TODO(synk): reduction='none' (per-element loss output) not implemented here.
        raise NotImplementedError("reduction='none' not implemented in this kernel")

    return loss_weight * out


def _focal_loss_ref(logits, targets, *, gamma=2.0, alpha=-1.0,
                    reduction="sum", loss_weight=1.0):
    """Pure-JAX reference mirroring the PyTorch module."""
    C = logits.shape[1]
    t = jax.nn.one_hot(targets, C + 1, axis=1, dtype=jnp.float32)[:, 1:]
    x = logits.astype(jnp.float32)
    bce = jnp.maximum(x, 0.0) - x * t + jnp.log1p(jnp.exp(-jnp.abs(x)))
    p = jax.nn.sigmoid(x)
    pt = p * t + (1.0 - p) * (1.0 - t)
    loss = jnp.power(1.0 - pt, gamma) * bce
    if alpha >= 0:
        loss = (alpha * t + (1.0 - alpha) * (1.0 - t)) * loss
    if reduction == "sum":
        loss = jnp.sum(loss)
    elif reduction == "mean":
        loss = jnp.mean(loss)
    return loss_weight * loss


if __name__ == "__main__":
    key = jax.random.PRNGKey(0)
    k1, k2, k3, k4 = jax.random.split(key, 4)

    # Case 1: module defaults (gamma=2, alpha=-1, reduction='sum'), HW % 128 == 0.
    N, C, H, W = 2, 4, 16, 16
    logits = jax.random.normal(k1, (N, C, H, W), dtype=jnp.float32)
    targets = jax.random.randint(k2, (N, H, W), 0, C + 1, dtype=jnp.int32)

    out = jax.block_until_ready(
        focal_loss_with_logits_tpu(logits, targets, gamma=2.0, alpha=-1.0,
                                   reduction="sum", loss_weight=1.0))
    ref = _focal_loss_ref(logits, targets, gamma=2.0, alpha=-1.0,
                          reduction="sum", loss_weight=1.0)
    np.testing.assert_allclose(np.asarray(out), np.asarray(ref), rtol=1e-5, atol=1e-5)

    # Case 2: alpha weighting + mean reduction + loss_weight.
    out2 = jax.block_until_ready(
        focal_loss_with_logits_tpu(logits, targets, gamma=2.0, alpha=0.25,
                                   reduction="mean", loss_weight=2.0))
    ref2 = _focal_loss_ref(logits, targets, gamma=2.0, alpha=0.25,
                           reduction="mean", loss_weight=2.0)
    np.testing.assert_allclose(np.asarray(out2), np.asarray(ref2), rtol=1e-5, atol=1e-5)

    # Case 3: ragged spatial size (HW % 128 != 0) exercising the padded-tail mask.
    logits_r = jax.random.normal(k3, (N, C, 10, 10), dtype=jnp.float32)
    targets_r = jax.random.randint(k4, (N, 10, 10), 0, C + 1, dtype=jnp.int32)
    out3 = jax.block_until_ready(
        focal_loss_with_logits_tpu(logits_r, targets_r, gamma=2.0, alpha=0.5,
                                   reduction="sum", loss_weight=1.0))
    ref3 = _focal_loss_ref(logits_r, targets_r, gamma=2.0, alpha=0.5,
                           reduction="sum", loss_weight=1.0)
    np.testing.assert_allclose(np.asarray(out3), np.asarray(ref3), rtol=1e-5, atol=1e-5)

    print("KERNEL_OK")
</pallas_src>

<mosaic_0001>
module attributes {stable_mosaic.version = 11 : i64} {
  func.func @_focal_kernel(%arg0: i32, %arg1: i32, %arg2: i32, %arg3: memref<1x4x2x128xf32, #tpu.memory_space<vmem>>, %arg4: memref<1x1x2x128xi32, #tpu.memory_space<vmem>>, %arg5: memref<1x1x2x128xf32, #tpu.memory_space<vmem>>, %arg6: memref<2x128xf32, #tpu.memory_space<vmem>>) attributes {dimension_semantics = [#tpu.dimension_semantics<parallel>, #tpu.dimension_semantics<parallel>, #tpu.dimension_semantics<arbitrary>], iteration_bounds = array<i64: 2, 1, 1>, scalar_prefetch = 0 : i64, scratch_operands = 1 : i64, tpu.core_type = #tpu.core_type<tc>, window_params = [{transform_indices = @transform_0, window_bounds = array<i64: 1, 4, 2, 128>}, {transform_indices = @transform_1, window_bounds = array<i64: 1, 1, 2, 128>}, {transform_indices = @transform_2, window_bounds = array<i64: 1, 1, 2, 128>}]} {
    %c0_i32 = arith.constant 0 : i32
    %0 = arith.cmpi eq, %arg2, %c0_i32 : i32
    %1 = arith.extui %0 : i1 to i32
    %c0_i32_0 = arith.constant 0 : i32
    %2 = arith.cmpi ne, %1, %c0_i32_0 : i32
    scf.if %2 {
      %cst_22 = arith.constant 0.000000e+00 : f32
      %46 = vector.broadcast %cst_22 : f32 to vector<2x128xf32>
      %c0_23 = arith.constant 0 : index
      %c0_24 = arith.constant 0 : index
      %47 = vector.load %arg6[%c0_23, %c0_24] : memref<2x128xf32, #tpu.memory_space<vmem>>, vector<2x128xf32>
      tpu.vector_store %arg6[%c0_23, %c0_24], %46 {strides = array<i32>} : memref<2x128xf32, #tpu.memory_space<vmem>>, vector<2x128xf32>,
    } else {
    }
    %c0 = arith.constant 0 : index
    %c0_1 = arith.constant 0 : index
    %c0_2 = arith.constant 0 : index
    %c0_3 = arith.constant 0 : index
    %3 = vector.load %arg3[%c0, %c0_1, %c0_2, %c0_3] : memref<1x4x2x128xf32, #tpu.memory_space<vmem>>, vector<1x4x2x128xf32>
    %4 = vector.shape_cast %3 : vector<1x4x2x128xf32> to vector<4x2x128xf32>
    %c0_4 = arith.constant 0 : index
    %c0_5 = arith.constant 0 : index
    %c0_6 = arith.constant 0 : index
    %c0_7 = arith.constant 0 : index
    %5 = vector.load %arg4[%c0_4, %c0_5, %c0_6, %c0_7] : memref<1x1x2x128xi32, #tpu.memory_space<vmem>>, vector<1x1x2x128xi32>
    %6 = vector.shape_cast %5 : vector<1x1x2x128xi32> to vector<2x128xi32>
    %7 = tpu.iota {dimensions = array<i32: 0>} : vector<4x2x128xi32>
    %c1_i32 = arith.constant 1 : i32
    %8 = vector.broadcast %c1_i32 : i32 to vector<4x2x128xi32>
    %9 = arith.addi %7, %8 : vector<4x2x128xi32>
    %10 = vector.shape_cast %6 : vector<2x128xi32> to vector<1x2x128xi32>
    %11 = vector.broadcast %10 : vector<1x2x128xi32> to vector<4x2x128xi32>
    %12 = arith.cmpi eq, %11, %9 : vector<4x2x128xi32>
    %13 = math.absf %4 : vector<4x2x128xf32>
    %cst = arith.constant 0.000000e+00 : f32
    %14 = vector.broadcast %cst : f32 to vector<4x2x128xf32>
    %15 = arith.subf %14, %13 : vector<4x2x128xf32>
    %16 = math.exp %15 : vector<4x2x128xf32>
    %cst_8 = arith.constant 0.000000e+00 : f32
    %17 = vector.broadcast %cst_8 : f32 to vector<4x2x128xf32>
    %18 = arith.maximumf %4, %17 : vector<4x2x128xf32>
    %cst_9 = arith.constant 0.000000e+00 : f32
    %19 = vector.broadcast %cst_9 : f32 to vector<4x2x128xf32>
    %20 = arith.select %12, %4, %19 : vector<4x2x128xi1>, vector<4x2x128xf32>
    %21 = arith.subf %18, %20 : vector<4x2x128xf32>
    %22 = math.log1p %16 : vector<4x2x128xf32>
    %23 = arith.addf %21, %22 : vector<4x2x128xf32>
    %cst_10 = arith.constant 1.000000e+00 : f32
    %24 = vector.broadcast %cst_10 : f32 to vector<4x2x128xf32>
    %25 = arith.addf %24, %16 : vector<4x2x128xf32>
    %cst_11 = arith.constant 1.000000e+00 : f32
    %26 = vector.broadcast %cst_11 : f32 to vector<4x2x128xf32>
    %27 = arith.divf %26, %25 : vector<4x2x128xf32>
    %cst_12 = arith.constant 0.000000e+00 : f32
    %28 = vector.broadcast %cst_12 : f32 to vector<4x2x128xf32>
    %29 = arith.cmpf oge, %4, %28 : vector<4x2x128xf32>
    %30 = arith.mulf %16, %27 : vector<4x2x128xf32>
    %31 = arith.select %29, %27, %30 : vector<4x2x128xi1>, vector<4x2x128xf32>
    %cst_13 = arith.constant 1.000000e+00 : f32
    %32 = vector.broadcast %cst_13 : f32 to vector<4x2x128xf32>
    %33 = arith.subf %32, %31 : vector<4x2x128xf32>
    %34 = arith.select %12, %31, %33 : vector<4x2x128xi1>, vector<4x2x128xf32>
    %cst_14 = arith.constant 1.000000e+00 : f32
    %35 = vector.broadcast %cst_14 : f32 to vector<4x2x128xf32>
    %36 = arith.subf %35, %34 : vector<4x2x128xf32>
    %37 = arith.mulf %36, %36 : vector<4x2x128xf32>
    %38 = arith.mulf %37, %23 : vector<4x2x128xf32>
    %cst_15 = arith.constant dense<0.000000e+00> : vector<2x128xf32>
    %39 = vector.multi_reduction <add>, %38, %cst_15 [0] : vector<4x2x128xf32> to vector<2x128xf32>
    %c0_16 = arith.constant 0 : index
    %c0_17 = arith.constant 0 : index
    %40 = vector.load %arg6[%c0_16, %c0_17] : memref<2x128xf32, #tpu.memory_space<vmem>>, vector<2x128xf32>
    %41 = arith.addf %40, %39 : vector<2x128xf32>
    %c0_18 = arith.constant 0 : index
    %c0_19 = arith.constant 0 : index
    %42 = vector.load %arg6[%c0_18, %c0_19] : memref<2x128xf32, #tpu.memory_space<vmem>>, vector<2x128xf32>
    tpu.vector_store %arg6[%c0_18, %c0_19], %41 {strides = array<i32>} : memref<2x128xf32, #tpu.memory_space<vmem>>, vector<2x128xf32>,
    %c0_i32_20 = arith.constant 0 : i32
    %43 = arith.cmpi eq, %arg2, %c0_i32_20 : i32
    %44 = arith.extui %43 : i1 to i32
    %c0_i32_21 = arith.constant 0 : i32
    %45 = arith.cmpi ne, %44, %c0_i32_21 : i32
    scf.if %45 {
      %c0_22 = arith.constant 0 : index
      %c0_23 = arith.constant 0 : index
      %46 = vector.load %arg6[%c0_22, %c0_23] : memref<2x128xf32, #tpu.memory_space<vmem>>, vector<2x128xf32>
      %c0_24 = arith.constant 0 : index
      %c0_25 = arith.constant 0 : index
      %c0_26 = arith.constant 0 : index
      %c0_27 = arith.constant 0 : index
      %47 = vector.load %arg5[%c0_24, %c0_25, %c0_26, %c0_27] : memref<1x1x2x128xf32, #tpu.memory_space<vmem>>, vector<1x1x2x128xf32>
      %48 = vector.shape_cast %47 : vector<1x1x2x128xf32> to vector<2x128xf32>
      %49 = vector.shape_cast %46 : vector<2x128xf32> to vector<1x1x2x128xf32>
      tpu.vector_store %arg5[%c0_24, %c0_25, %c0_26, %c0_27], %49 {strides = array<i32>} : memref<1x1x2x128xf32, #tpu.memory_space<vmem>>, vector<1x1x2x128xf32>,
    } else {
    }
    return
  }
  func.func @transform_0(%arg0: i32, %arg1: i32, %arg2: i32) -> (i32, i32, i32, i32) {
    %c1_i32 = arith.constant 1 : i32
    %0 = arith.muli %arg1, %c1_i32 : i32
    %1 = arith.addi %0, %arg2 : i32
    %c0_i32 = arith.constant 0 : i32
    %c0_i32_0 = arith.constant 0 : i32
    %c0_i32_1 = arith.constant 0 : i32
    return %arg0, %c0_i32, %1, %c0_i32_0 : i32, i32, i32, i32
  }
  func.func @transform_1(%arg0: i32, %arg1: i32, %arg2: i32) -> (i32, i32, i32, i32) {
    %c1_i32 = arith.constant 1 : i32
    %0 = arith.muli %arg1, %c1_i32 : i32
    %1 = arith.addi %0, %arg2 : i32
    %c0_i32 = arith.constant 0 : i32
    %c0_i32_0 = arith.constant 0 : i32
    %c0_i32_1 = arith.constant 0 : i32
    return %arg0, %c0_i32, %1, %c0_i32_0 : i32, i32, i32, i32
  }
  func.func @transform_2(%arg0: i32, %arg1: i32, %arg2: i32) -> (i32, i32, i32, i32) {
    %c0_i32 = arith.constant 0 : i32
    %c0_i32_0 = arith.constant 0 : i32
    %c0_i32_1 = arith.constant 0 : i32
    return %arg0, %arg1, %c0_i32, %c0_i32_0 : i32, i32, i32, i32
  }
}

</mosaic_0001>

<llo_original>
// kernel: tpu_custom_call.1
$region0: #{tpu_custom_call.1}
  #allocation0 [shape = 'u32[]', space=smem, size = 0x4, offset = 0x4, fixed_abs, tag = 'smem constant byte address 0x4 - core index']
  #allocation1 [shape = 'u32[144,128]{1,0:T(1,128)}', space=vmem, size = 0x12000, scoped, tag = 'internal scratch']
  #allocation2 [shape = 'f32[2,128]{1,0:T(2,128)}', space=vmem, size = 0x400, scoped, tag = 'scratch operand']
  %s0 = inlined_call_operand.hbm [shape: f32[2,4,2,128], index: 0, kind: input, shape index: {}]
  %s1 = inlined_call_operand.hbm [shape: s32[2,1,2,128], index: 1, kind: input, shape index: {}]
  %s2 = inlined_call_operand.hbm [shape: f32[2,1,2,128], index: 2, kind: output, shape index: {}]
  %s3 = sld [smem:[#allocation0]]
  $region57: #{tpu_custom_call.1} parent=0
    _
  %s5 = ssub.s32 1, %s3
  %s6 = scalar_select 0, %s5, %s3
  $region1: #{tpu_custom_call.1} parent=0
    #allocation3 [shape = 'u8[8192]{0}', space=vmem, size = 0x2000, scoped, tag = 'input window, operand 0']
    #allocation4 [shape = 's32[2]{0}', space=sflag, size = 0x8, scoped, tag = 'scoped memory for tpu_custom_call.1']
    #allocation5 [shape = 's32[2]{0}', space=sflag, size = 0x8, scoped, tag = 'scoped memory for tpu_custom_call.1']
    #allocation6 [shape = 'u8[2048]{0}', space=vmem, size = 0x800, scoped, tag = 'input window, operand 1']
    #allocation7 [shape = 's32[2]{0}', space=sflag, size = 0x8, scoped, tag = 'scoped memory for tpu_custom_call.1']
    #allocation8 [shape = 'u8[2048]{0}', space=vmem, size = 0x800, scoped, tag = 'output window, operand 0']
    %7 = vsyncpa [#allocation4], 0
    %s8 = scalar_lea.sflag [#allocation4], 1
    %9 = vsyncpa %s8, 0
    %10 = vsyncpa [#allocation7], 0
    %s11 = scalar_lea.sflag [#allocation7], 1
    %12 = vsyncpa %s11, 0
    %13 = vsyncpa [#allocation5], 0
    %s14 = scalar_lea.sflag [#allocation5], 1
    %15 = vsyncpa %s14, 0
    loop: start=0, step=1, limit=4
    $region2: #{tpu_custom_call.1} parent=1 // loop_pre_header
      _
    $region3: #{tpu_custom_call.1} parent=1 // loop_header
      %s17 = sphi 0, %s21
      %p18 = scmp.ge.s32.totalorder %s17, 4
      %s24 = sphi 0, %s43
      %s25 = sphi 0, %s39
      %s26 = sphi 0, %s35
      %s27 = sphi 0, %s24
      %s28 = sphi 0, %s25
      %s29 = sphi 0, %s26
      %s30 = sphi 0, %s27
      %s31 = sphi 0, %s28
      %s32 = sphi 0, %s29
      %s50 = sphi 0, %s52
      %s53 = sphi 0, %s50
      %s54 = sphi 0, %s53
      %s70 = sphi 0, %s54
      %s80 = sphi 0, %s82
      %s83 = sphi 0, %s80
      %s84 = sphi 0, %s83
      %s100 = sphi 0, %s84
      %s108 = sphi 0, %s110
      %s111 = sphi 0, %s108
      %s112 = sphi 0, %s111
      %s128 = sphi 0, %s112
    $region4: #{tpu_custom_call.1} parent=1 // loop_header_branch
      %20 = sbr.rel (%p18) target = $region8
    $region5: #{tpu_custom_call.1} parent=1 // loop_body
      %s22 = ssub.s32 %s17, 1
      %s23 = ssub.s32 %s17, 2
      %s33 = sadd.s32 1, %s26
      %p34 = scmp.ge.s32.totalorder %s33, 1
      %s35 = scalar_select %p34, 0, %s33
      %s36 = sadd.s32 1, %s25
      %s37 = scalar_select %p34, %s36, %s25
      %p38 = scmp.ge.s32.totalorder %s37, 1
      %s39 = scalar_select %p38, 0, %s37
      %s40 = sadd.s32 1, %s24
      %s41 = scalar_select %p38, %s40, %s24
      %p42 = scmp.ge.s32.totalorder %s41, 2
      %s43 = scalar_select %p42, 0, %s41
      %s44 = sadd.s32 %s25, %s26
      %s45 = sadd.s32 %s39, %s35
      %s46 = ssub.s32 %s24, %s43
      %s47 = ssub.s32 %s44, %s45
      %s48 = sor.u32 %s46, %s47
      %p49 = scmp.eq.s32.totalorder %s48, 0
      %s51 = sadd.s32 %s50, 1
      %s52 = scalar_select %p49, %s50, %s51
      %p55 = pneg %p49
      %p56 = scmp.eq.s32.totalorder %s17, 1
      %p57 = por %p55, %p56
      %p58 = scmp.ne.s32.totalorder %s50, %s53
      %p59 = scmp.eq.s32.totalorder %s17, 0
      %p60 = por %p58, %p59
      %p61 = scmp.ne.s32.totalorder %s50, %s53
      %p62 = scmp.eq.s32.totalorder %s22, 1
      %p63 = por %p61, %p62
      %p64 = scmp.ne.s32.totalorder %s53, %s54
      %p65 = scmp.eq.s32.totalorder %s22, 0
      %p66 = por %p64, %p65
      %p67 = scmp.ne.s32.totalorder %s53, %s54
      %p68 = scmp.eq.s32.totalorder %s23, 1
      %p69 = por %p67, %p68
      %p71 = scmp.ne.s32.totalorder %s54, %s70
      %p72 = scmp.eq.s32.totalorder %s23, 0
      %p73 = por %p71, %p72
      %s74 = sadd.s32 %s25, %s26
      %s75 = sadd.s32 %s39, %s35
      %s76 = ssub.s32 %s24, %s43
      %s77 = ssub.s32 %s74, %s75
      %s78 = sor.u32 %s76, %s77
      %p79 = scmp.eq.s32.totalorder %s78, 0
      %s81 = sadd.s32 %s80, 1
      %s82 = scalar_select %p79, %s80, %s81
      %p85 = pneg %p79
      %p86 = scmp.eq.s32.totalorder %s17, 1
      %p87 = por %p85, %p86
      %p88 = scmp.ne.s32.totalorder %s80, %s83
      %p89 = scmp.eq.s32.totalorder %s17, 0
      %p90 = por %p88, %p89
      %p91 = scmp.ne.s32.totalorder %s80, %s83
      %p92 = scmp.eq.s32.totalorder %s22, 1
      %p93 = por %p91, %p92
      %p94 = scmp.ne.s32.totalorder %s83, %s84
      %p95 = scmp.eq.s32.totalorder %s22, 0
      %p96 = por %p94, %p95
      %p97 = scmp.ne.s32.totalorder %s83, %s84
      %p98 = scmp.eq.s32.totalorder %s23, 1
      %p99 = por %p97, %p98
      %p101 = scmp.ne.s32.totalorder %s84, %s100
      %p102 = scmp.eq.s32.totalorder %s23, 0
      %p103 = por %p101, %p102
      %s104 = ssub.s32 %s24, %s43
      %s105 = ssub.s32 %s25, %s39
      %s106 = sor.u32 %s104, %s105
      %p107 = scmp.eq.s32.totalorder %s106, 0
      %s109 = sadd.s32 %s108, 1
      %s110 = scalar_select %p107, %s108, %s109
      %p113 = pneg %p107
      %p114 = scmp.eq.s32.totalorder %s17, 1
      %p115 = por %p113, %p114
      %p116 = scmp.ne.s32.totalorder %s108, %s111
      %p117 = scmp.eq.s32.totalorder %s17, 0
      %p118 = por %p116, %p117
      %p119 = scmp.ne.s32.totalorder %s108, %s111
      %p120 = scmp.eq.s32.totalorder %s22, 1
      %p121 = por %p119, %p120
      %p122 = scmp.ne.s32.totalorder %s111, %s112
      %p123 = scmp.eq.s32.totalorder %s22, 0
      %p124 = por %p122, %p123
      %p125 = scmp.ne.s32.totalorder %s111, %s112
      %p126 = scmp.eq.s32.totalorder %s23, 1
      %p127 = por %p125, %p126
      %p129 = scmp.ne.s32.totalorder %s112, %s128
      %p130 = scmp.eq.s32.totalorder %s23, 0
      %p131 = por %p129, %p130
      %p132 = scmp.le.s32.totalorder 1, %s17
      %p133 = scmp.lt.s32.totalorder %s17, 3
      %p134 = pnand %p132, %p133
      %p135 = pneg %p134
      // Predicated region
      $region9: #{tpu_custom_call.1} parent=5 // pred_check
        _
      $region10: #{tpu_custom_call.1} parent=5 // pred_check_branch
        %137 = sbr.rel (%p134) target = $region12
      $region11: #{tpu_custom_call.1} parent=5 // pred_region
        %s138 = ssub.s32 %s17, 1
      $region12: #{tpu_custom_call.1} parent=5 // pred_fallthru
        _
      %p139 = scmp.lt.s32.totalorder %s17, 2
      // Predicated region
      $region13: #{tpu_custom_call.1} parent=5 // pred_check
        %p140 = pneg %p139
      $region14: #{tpu_custom_call.1} parent=5 // pred_check_branch
        %142 = sbr.rel (%p140) target = $region16
      $region15: #{tpu_custom_call.1} parent=5 // pred_region
        // Predicated region
        $region17: #{tpu_custom_call.1} parent=15 // pred_check
          %p143 = pneg %p60
        $region18: #{tpu_custom_call.1} parent=15 // pred_check_branch
          %145 = sbr.rel (%p143) target = $region20
        $region19: #{tpu_custom_call.1} parent=15 // pred_region
          %s146 = sand.u32 %s50, 1
          %s147 = scalar_lea.sflag [#allocation4], %s146
          %s148 = sand.u32 %s50, 1
          %s149 = smul.addr %s148, 8
          %s150 = scalar_lea.vmem [#allocation3], %s149
          %s151 = sadd.s32 %s25, %s26
          %s153 = ssub.s32 128, 128
          %154 = vsyncadd %s147, %s153
          %s155 = smul.addr %s24, 4
          %s156 = sadd.s32 %s151, %s155
          %s157 = smul.addr %s156, 32
          %s158 = scalar_lea.hbm %s0, %s157
          %s159 = sshll.u32 %s150, 4
          %s160 = int_to_ptr.vmem [resolvable:$true] %s159
          %165 = dma.hbm_to_vmem [thread:$0]  %s158, 128, %s160, %s147, 32, 32, 2
        $region20: #{tpu_custom_call.1} parent=15 // pred_fallthru
          _
        // Predicated region
        $region21: #{tpu_custom_call.1} parent=15 // pred_check
          %p166 = pneg %p90
        $region22: #{tpu_custom_call.1} parent=15 // pred_check_branch
          %168 = sbr.rel (%p166) target = $region24
        $region23: #{tpu_custom_call.1} parent=15 // pred_region
          %s169 = sand.u32 %s80, 1
          %s170 = scalar_lea.sflag [#allocation7], %s169
          %s171 = sand.u32 %s80, 1
          %s172 = smul.addr %s171, 2
          %s173 = scalar_lea.vmem [#allocation6], %s172
          %s174 = sadd.s32 %s25, %s26
          %s176 = ssub.s32 32, 32
          %177 = vsyncadd %s170, %s176
          %s178 = sadd.s32 %s174, %s24
          %s179 = smul.addr %s178, 32
          %s180 = scalar_lea.hbm %s1, %s179
          %s182 = sshll.u32 %s173, 4
          %s183 = int_to_ptr.vmem [resolvable:$true] %s182
          %185 = dma.hbm_to_vmem [thread:$0]  %s180, 32, %s183, %s170
        $region24: #{tpu_custom_call.1} parent=15 // pred_fallthru
          _
      $region16: #{tpu_custom_call.1} parent=5 // pred_fallthru
        _
      %p186 = scmp.le.s32.totalorder 1, %s17
      %p187 = scmp.lt.s32.totalorder %s17, 3
      %p188 = pnand %p186, %p187
      %p189 = pneg %p188
      // Predicated region
      $region25: #{tpu_custom_call.1} parent=5 // pred_check
        _
      $region26: #{tpu_custom_call.1} parent=5 // pred_check_branch
        %191 = sbr.rel (%p188) target = $region28
      $region27: #{tpu_custom_call.1} parent=5 // pred_region
        %s192 = ssub.s32 %s17, 1
        %s193 = sand.u32 %s53, 1
        %s194 = scalar_lea.sflag [#allocation4], %s193
        %s195 = sand.u32 %s53, 1
        %s196 = smul.addr %s195, 8
        %s197 = scalar_lea.vmem [#allocation3], %s196
        // Predicated region
        $region29: #{tpu_custom_call.1} parent=27 // pred_check
          %p198 = pneg %p66
        $region30: #{tpu_custom_call.1} parent=27 // pred_check_branch
          %200 = sbr.rel (%p198) target = $region32
        $region31: #{tpu_custom_call.1} parent=27 // pred_region
          %201 = dma.done %s194, 128
        $region32: #{tpu_custom_call.1} parent=27 // pred_fallthru
          _
        %s202 = sand.u32 %s83, 1
        %s203 = scalar_lea.sflag [#allocation7], %s202
        %s204 = sand.u32 %s83, 1
        %s205 = smul.addr %s204, 2
        %s206 = scalar_lea.vmem [#allocation6], %s205
        // Predicated region
        $region33: #{tpu_custom_call.1} parent=27 // pred_check
          %p207 = pneg %p96
        $region34: #{tpu_custom_call.1} parent=27 // pred_check_branch
          %209 = sbr.rel (%p207) target = $region36
        $region35: #{tpu_custom_call.1} parent=27 // pred_region
          %210 = dma.done %s203, 32
        $region36: #{tpu_custom_call.1} parent=27 // pred_fallthru
          _
        %s211 = sand.u32 %s53, 1
        %s212 = scalar_lea.sflag [#allocation4], %s211
        %s213 = sand.u32 %s53, 1
        %s214 = smul.addr %s213, 8
        %s215 = scalar_lea.vmem [#allocation3], %s214
        %p216 = pneg %p66
        %p217 = pneg %p63
        %s218 = sand.u32 %s83, 1
        %s219 = scalar_lea.sflag [#allocation7], %s218
        %s220 = sand.u32 %s83, 1
        %s221 = smul.addr %s220, 2
        %s222 = scalar_lea.vmem [#allocation6], %s221
        %p223 = pneg %p96
        %p224 = pneg %p93
        %p225 = pneg %p124
        %p226 = pneg %p121
        %s227 = sand.u32 %s111, 1
        %s228 = scalar_lea.sflag [#allocation5], %s227
        %s229 = sand.u32 %s111, 1
        %s230 = smul.addr %s229, 2
        %s231 = scalar_lea.vmem [#allocation8], %s230
        %s232 = sadd.s32 %s28, %s29
        %s233 = sadd.s32 %s28, %s29
        %p234 = scmp.eq.s32.totalorder %s29, 0
        // Predicated region
        $region37: #{tpu_custom_call.1} parent=27 // pred_check
          %p235 = pneg %p234
        $region38: #{tpu_custom_call.1} parent=27 // pred_check_branch
          %237 = sbr.rel (%p235) target = $region40
        $region39: #{tpu_custom_call.1} parent=27 // pred_region
          %238 = vst [vmem:[#allocation2] sm:$0x3] 0.0
        $region40: #{tpu_custom_call.1} parent=27 // pred_fallthru
          _
        %v239 = vld [vmem:[%s197] sm:$0x3]
        %v240 = vld [vmem:[%s197 + $0x2] sm:$0x3]
        %v241 = vld [vmem:[%s197 + $0x4] sm:$0x3]
        %v242 = vld [vmem:[%s197 + $0x6] sm:$0x3]
        %v243 = vld [vmem:[%s206] sm:$0x3]
        %vm244 = vcmp.eq.s32.totalorder %v243, 1
        %vm245 = vcmp.eq.s32.totalorder %v243, 2
        %vm246 = vcmp.eq.s32.totalorder %v243, 3
        %vm247 = vcmp.eq.s32.totalorder %v243, 4
        %v248 = vand.u32 2147483647, %v239
        %v249 = vand.u32 2147483647, %v240
        %v250 = vand.u32 2147483647, %v241
        %v251 = vand.u32 2147483647, %v242
        %v252 = vsub.f32 0.0, %v248
        %v253 = vsub.f32 0.0, %v249
        %v254 = vsub.f32 0.0, %v250
        %v255 = vsub.f32 0.0, %v251
        %v256 = vmul.f32 %v252, 1.442695
        %v257 = vpow.pop %v256
        %v258 = vmul.f32 %v253, 1.442695
        %v259 = vpow.pop %v258
        %v260 = vmul.f32 %v254, 1.442695
        %v261 = vpow.pop %v260
        %v262 = vmul.f32 %v255, 1.442695
        %v263 = vpow.pop %v262
        %v264 = vmax.f32 %v239, 0.0
        %v265 = vmax.f32 %v240, 0.0
        %v266 = vmax.f32 %v241, 0.0
        %v267 = vmax.f32 %v242, 0.0
        %v268 = vsel %vm244, %v239, 0.0
        %v269 = vsel %vm245, %v240, 0.0
        %v270 = vsel %vm246, %v241, 0.0
        %v271 = vsel %vm247, %v242, 0.0
        %v272 = vsub.f32 %v264, %v268
        %v273 = vsub.f32 %v265, %v269
        %v274 = vsub.f32 %v266, %v270
        %v275 = vsub.f32 %v267, %v271
        %v276 = vadd.f32 %v257, 1.0
        %v277 = vlog2.pop %v276
        %v278 = vmul.f32 %v277, 0.6931472
        %v279 = vmul.f32 -0.5, %v257
        %v280 = vadd.f32 %v279, 1.0
        %v281 = vmul.f32 %v280, %v257
        %v282 = vand.u32 2147483647, %v257
        %vm283 = vcmp.lt.f32.partialorder %v282, 0.0004427343
        %v284 = vsel %vm283, %v281, %v278
        %v285 = vadd.f32 %v259, 1.0
        %v286 = vlog2.pop %v285
        %v287 = vmul.f32 %v286, 0.6931472
        %v288 = vmul.f32 -0.5, %v259
        %v289 = vadd.f32 %v288, 1.0
        %v290 = vmul.f32 %v289, %v259
        %v291 = vand.u32 2147483647, %v259
        %vm292 = vcmp.lt.f32.partialorder %v291, 0.0004427343
        %v293 = vsel %vm292, %v290, %v287
        %v294 = vadd.f32 %v261, 1.0
        %v295 = vlog2.pop %v294
        %v296 = vmul.f32 %v295, 0.6931472
        %v297 = vmul.f32 -0.5, %v261
        %v298 = vadd.f32 %v297, 1.0
        %v299 = vmul.f32 %v298, %v261
        %v300 = vand.u32 2147483647, %v261
        %vm301 = vcmp.lt.f32.partialorder %v300, 0.0004427343
        %v302 = vsel %vm301, %v299, %v296
        %v303 = vadd.f32 %v263, 1.0
        %v304 = vlog2.pop %v303
        %v305 = vmul.f32 %v304, 0.6931472
        %v306 = vmul.f32 -0.5, %v263
        %v307 = vadd.f32 %v306, 1.0
        %v308 = vmul.f32 %v307, %v263
        %v309 = vand.u32 2147483647, %v263
        %vm310 = vcmp.lt.f32.partialorder %v309, 0.0004427343
        %v311 = vsel %vm310, %v308, %v305
        %v312 = vadd.f32 %v272, %v284
        %v313 = vadd.f32 %v273, %v293
        %v314 = vadd.f32 %v274, %v302
        %v315 = vadd.f32 %v275, %v311
        %v316 = vadd.f32 %v257, 1.0
        %v317 = vadd.f32 %v259, 1.0
        %v318 = vadd.f32 %v261, 1.0
        %v319 = vadd.f32 %v263, 1.0
        %v320 = vrcp.pop %v316
        %v321 = vmul.f32 1.0, %v320
        %v322 = vrcp.pop %v317
        %v323 = vmul.f32 1.0, %v322
        %v324 = vrcp.pop %v318
        %v325 = vmul.f32 1.0, %v324
        %v326 = vrcp.pop %v319
        %v327 = vmul.f32 1.0, %v326
        %vm328 = vcmp.ge.f32.partialorder %v239, 0.0
        %vm329 = vcmp.ge.f32.partialorder %v240, 0.0
        %vm330 = vcmp.ge.f32.partialorder %v241, 0.0
        %vm331 = vcmp.ge.f32.partialorder %v242, 0.0
        %v332 = vmul.f32 %v257, %v321
        %v333 = vmul.f32 %v259, %v323
        %v334 = vmul.f32 %v261, %v325
        %v335 = vmul.f32 %v263, %v327
        %v336 = vsel %vm328, %v321, %v332
        %v337 = vsel %vm329, %v323, %v333
        %v338 = vsel %vm330, %v325, %v334
        %v339 = vsel %vm331, %v327, %v335
        %v340 = vsub.f32 1.0, %v336
        %v341 = vsub.f32 1.0, %v337
        %v342 = vsub.f32 1.0, %v338
        %v343 = vsub.f32 1.0, %v339
        %v344 = vsel %vm244, %v336, %v340
        %v345 = vsel %vm245, %v337, %v341
        %v346 = vsel %vm246, %v338, %v342
        %v347 = vsel %vm247, %v339, %v343
        %v348 = vsub.f32 1.0, %v344
        %v349 = vsub.f32 1.0, %v345
        %v350 = vsub.f32 1.0, %v346
        %v351 = vsub.f32 1.0, %v347
        %v352 = vmul.f32 %v348, %v348
        %v353 = vmul.f32 %v349, %v349
        %v354 = vmul.f32 %v350, %v350
        %v355 = vmul.f32 %v351, %v351
        %v356 = vmul.f32 %v352, %v312
        %v357 = vmul.f32 %v353, %v313
        %v358 = vmul.f32 %v354, %v314
        %v359 = vmul.f32 %v355, %v315
        %vm360 = vcmask 1041408
        %v361 = vsel %vm360, %v356, 0.0
        %v362 = vsel %vm360, %v357, 0.0
        %v363 = vadd.f32 %v361, %v362
        %v364 = vsel %vm360, %v358, 0.0
        %v365 = vadd.f32 %v363, %v364
        %v366 = vsel %vm360, %v359, 0.0
        %v367 = vadd.f32 %v365, %v366
        %v368 = vld [vmem:[#allocation2] sm:$0x3]
        %v369 = vadd.f32 %v368, %v367
        %370 = vst [vmem:[#allocation2] sm:$0x3] %v369
        // Predicated region
        $region41: #{tpu_custom_call.1} parent=27 // pred_check
          %p371 = pneg %p234
        $region42: #{tpu_custom_call.1} parent=27 // pred_check_branch
          %373 = sbr.rel (%p371) target = $region44
        $region43: #{tpu_custom_call.1} parent=27 // pred_region
          %v374 = vld [vmem:[#allocation2] sm:$0x3]
          %375 = vst [vmem:[%s231] sm:$0x3] %v374
        $region44: #{tpu_custom_call.1} parent=27 // pred_fallthru
          _
        %s376 = sand.u32 %s111, 1
        %s377 = scalar_lea.sflag [#allocation5], %s376
        %s378 = sand.u32 %s111, 1
        %s379 = smul.addr %s378, 2
        %s380 = scalar_lea.vmem [#allocation8], %s379
        // Predicated region
        $region45: #{tpu_custom_call.1} parent=27 // pred_check
          %p381 = pneg %p121
        $region46: #{tpu_custom_call.1} parent=27 // pred_check_branch
          %383 = sbr.rel (%p381) target = $region48
        $region47: #{tpu_custom_call.1} parent=27 // pred_region
          %s385 = ssub.s32 32, 32
          %386 = vsyncadd %s377, %s385
          %s387 = sadd.s32 %s28, %s27
          %s388 = smul.addr %s387, 32
          %s389 = scalar_lea.hbm %s2, %s388
          %s391 = sshll.u32 %s380, 4
          %s392 = int_to_ptr.vmem [resolvable:$true] %s391
          %394 = dma.vmem_to_hbm [thread:$0]  %s392, 32, %s389, %s377
        $region48: #{tpu_custom_call.1} parent=27 // pred_fallthru
          _
      $region28: #{tpu_custom_call.1} parent=5 // pred_fallthru
        _
      %p395 = scmp.le.s32.totalorder 2, %s17
      // Predicated region
      $region49: #{tpu_custom_call.1} parent=5 // pred_check
        %p396 = pneg %p395
      $region50: #{tpu_custom_call.1} parent=5 // pred_check_branch
        %398 = sbr.rel (%p396) target = $region52
      $region51: #{tpu_custom_call.1} parent=5 // pred_region
        %s399 = ssub.s32 %s17, 2
        // Predicated region
        $region53: #{tpu_custom_call.1} parent=51 // pred_check
          %p400 = pneg %p127
        $region54: #{tpu_custom_call.1} parent=51 // pred_check_branch
          %402 = sbr.rel (%p400) target = $region56
        $region55: #{tpu_custom_call.1} parent=51 // pred_region
          %s403 = sand.u32 %s112, 1
          %s404 = scalar_lea.sflag [#allocation5], %s403
          %s405 = sand.u32 %s112, 1
          %s406 = smul.addr %s405, 2
          %s407 = scalar_lea.vmem [#allocation8], %s406
          %408 = dma.done %s404, 32
        $region56: #{tpu_custom_call.1} parent=51 // pred_fallthru
          _
      $region52: #{tpu_custom_call.1} parent=5 // pred_fallthru
        _
    $region6: #{tpu_custom_call.1} parent=1 // loop_footer
      %s21 = sadd.s32 1, %s17
    $region7: #{tpu_custom_call.1} parent=1 // loop_footer_branch
      %16 = sbr.rel target = $region3
    $region8: #{tpu_custom_call.1} parent=1 // loop_exit
      _
    %409 = vsyncpa [#allocation4], 1
    %s410 = scalar_lea.sflag [#allocation4], 1
    %411 = vsyncpa %s410, 1
    %412 = vsyncpa [#allocation7], 1
    %s413 = scalar_lea.sflag [#allocation7], 1
    %414 = vsyncpa %s413, 1
    %415 = vsyncpa [#allocation5], 1
    %s416 = scalar_lea.sflag [#allocation5], 1
    %417 = vsyncpa %s416, 1

</llo_original>
